<compile_context>
chip_gen: v6e
topology: v6e:2x2x1
jax: 0.10.0
libtpu: 0.0.40
codegen_flags: <defaults>
</compile_context>

<pallas_src>
import math

import jax
import jax.numpy as jnp
from jax.experimental import pallas as pl
from jax.experimental.pallas import tpu as pltpu


# ------------------------------- kernel -------------------------------------

def cgcn_kernel(xck_ref, adj_ref, den_ref, wc_ref, lbr_ref, gbr_ref, gbi_ref,
                outr_ref, outi_ref, acc_ref):
    """One (batch, row-tile, adj-column-tile) grid step.

    xck_ref : (tile_k, 2*F_in)  fused [x_real | x_imag] rows of this column tile
    adj_ref : (tile_i, tile_k)  adjacency tile (matmul dtype, e.g. bf16)
    den_ref : (tile_i, 1)       exact f32 row-degree + 1 (precomputed in wrapper)
    wc_ref  : (2*F_in, F_pad)   fused [W_real ; -W_imag], zero-padded to F_pad lanes
    lbr/gbr/gbi_ref : (1, F_pad) linear bias_real / gcn bias_real / gcn bias_imag
    out*_ref: (tile_i, F_pad)   lane-dense (F_pad % 128 == 0) output tiles
    acc_ref : (tile_i, F_pad)   f32 VMEM accumulator, resident across the k axis
    """
    k = pl.program_id(2)

    @pl.when(k == 0)
    def _():
        acc_ref[...] = jnp.zeros_like(acc_ref)

    # Fused ComplexLinear real path for this column tile (K = 2*F_in). Recomputed
    # per row tile, which is cheap since 2*F_in << tile_i; the linear bias is folded
    # in at finalize (exact f32) instead of being added here.
    hidden = jnp.dot(xck_ref[...], wc_ref[...],
                     preferred_element_type=jnp.float32)          # (tile_k, F_pad) f32

    # Partial graph aggregation for this adjacency column tile (MXU, f32 accumulate).
    acc_ref[...] += jnp.dot(adj_ref[...], hidden.astype(adj_ref.dtype),
                            preferred_element_type=jnp.float32)

    @pl.when(k == pl.num_programs(2) - 1)
    def _():
        den = den_ref[...]                           # (tile_i, 1), exact f32
        recip = pl.reciprocal(den, approx=True)      # EUP slot, ~free
        # adj @ (xW + b_lin) == adj @ xW + rowsum(adj) * b_lin, rowsum = den - 1.
        pre = (acc_ref[...] + (den - 1.0) * lbr_ref[...]) * recip + gbr_ref[...]
        outr_ref[...] = jnp.maximum(pre, 0.0)
        # Reproduces the original module: output_imag = output_real + bias_imag.
        outi_ref[...] = jnp.maximum(pre + gbi_ref[...], 0.0)


# ------------------------------- wrapper ------------------------------------

def _vmem_capacity_bytes():
    """Physical VMEM of the local TPU, or None if it cannot be queried."""
    try:
        return int(getattr(pltpu.get_tpu_info(), "vmem_capacity_bytes", 0)) or None
    except Exception:
        return None


def _pick_tile(n, target, quantum):
    """Largest divisor of n that is <= target and a multiple of `quantum`.
    Falls back to n itself (the full dim is always layout-legal)."""
    if n <= target:
        return n
    t = (target // quantum) * quantum
    while t >= quantum:
        if n % t == 0:
            return t
        t -= quantum
    return n


def cgcn_forward(x_real, x_imag, adj, w_real, w_imag,
                 lin_b_real, lin_b_imag, b_real, b_imag,
                 *, tile_i=None, tile_k=None, use_bf16=True):
    B, N, F_in = x_real.shape
    F_out = w_real.shape[1]
    # Pad the output feature dim to a 128-lane multiple so every output store is an
    # unmasked lane-dense vst (F_out=32 alone would force masked partial stores).
    F_pad = ((F_out + 127) // 128) * 128

    mm_dtype = jnp.bfloat16 if use_bf16 else jnp.float32

    vmem_cap = _vmem_capacity_bytes()
    if tile_i is None:
        tile_i = _pick_tile(N, 256, 8)           # sublane-quantized row tile
    if tile_k is None:
        # Halve the reduction tile on the 64-MiB-VMEM generation (v7x class).
        tgt_k = 512 if (vmem_cap or 0) >= (96 << 20) else 256
        tile_k = _pick_tile(N, tgt_k, 128)       # lane-quantized reduction tile
    assert N % tile_i == 0 and N % tile_k == 0, "tiles must divide N"

    # Fuse the two ComplexLinear real-path matmuls into one contraction (K = 2*F_in):
    #   x_real@Wr - x_imag@Wi == [x_real | x_imag] @ [Wr ; -Wi]
    xc = jnp.concatenate([x_real, x_imag], axis=-1).astype(mm_dtype)    # (B, N, 2F_in)
    wc = jnp.concatenate([w_real, -w_imag], axis=0)                     # (2F_in, F_out)
    wc = jnp.pad(wc, ((0, 0), (0, F_pad - F_out))).astype(mm_dtype)     # (2F_in, F_pad)
    adj_q = adj.astype(mm_dtype)

    # Exact f32 degree normalization, computed once here (XLA fuses it with the
    # adjacency cast pass above); avoids any f32 copy of adj inside the kernel.
    denom = jnp.sum(adj, axis=-1, keepdims=True) + 1.0                  # (B, N, 1) f32

    def _pad_bias(b):
        return jnp.pad(b.astype(jnp.float32), (0, F_pad - F_out)).reshape(1, F_pad)

    lbr = _pad_bias(lin_b_real)
    gbr = _pad_bias(b_real)
    gbi = _pad_bias(b_imag)
    # lin_b_imag only feeds the dead imaginary path of the reference forward
    # (upstream bug: output_imag = output_real + bias_imag), so it is never used.
    del lin_b_imag

    grid = (B, N // tile_i, N // tile_k)
    vmem_limit = int(min(0.9 * vmem_cap, 100 * (1 << 20))) if vmem_cap else None

    out_shape = (jax.ShapeDtypeStruct((B, N, F_pad), jnp.float32),
                 jax.ShapeDtypeStruct((B, N, F_pad), jnp.float32))

    def fixed(shape):
        return pl.BlockSpec(shape, lambda b, i, k: tuple(0 for _ in shape))

    outr, outi = pl.pallas_call(
        cgcn_kernel,
        out_shape=out_shape,
        grid=grid,
        in_specs=[
            pl.BlockSpec((None, tile_k, 2 * F_in), lambda b, i, k: (b, k, 0)),  # xc
            pl.BlockSpec((None, tile_i, tile_k),   lambda b, i, k: (b, i, k)),  # adj
            pl.BlockSpec((None, tile_i, 1),        lambda b, i, k: (b, i, 0)),  # denom
            fixed((2 * F_in, F_pad)),                                           # wc
            fixed((1, F_pad)),                                                  # lbr
            fixed((1, F_pad)),                                                  # gbr
            fixed((1, F_pad)),                                                  # gbi
        ],
        out_specs=(
            pl.BlockSpec((None, tile_i, F_pad), lambda b, i, k: (b, i, 0)),
            pl.BlockSpec((None, tile_i, F_pad), lambda b, i, k: (b, i, 0)),
        ),
        scratch_shapes=[pltpu.VMEM((tile_i, F_pad), jnp.float32)],
        compiler_params=pltpu.CompilerParams(
            dimension_semantics=("parallel", "parallel", "arbitrary"),
            vmem_limit_bytes=vmem_limit),
    )(xc, adj_q, denom, wc, lbr, gbr, gbi)

    # Strip the lane padding (cheap relative to the adjacency stream).
    return outr[..., :F_out], outi[..., :F_out]


# ---------------- parameter init (deterministic, mirrors init_weight) -------

def xavier_uniform(key, shape):
    fan_in, fan_out = shape
    limit = math.sqrt(6.0 / (fan_in + fan_out))
    return jax.random.uniform(key, shape, jnp.float32, -limit, limit)


def bias_uniform(key, n):
    stdv = 1.0 / math.sqrt(n)
    return jax.random.uniform(key, (n,), jnp.float32, -stdv, stdv)


# ---------------- pure-JAX f32 reference (matches PyTorch semantics) --------

def cgcn_reference(x_real, x_imag, adj, w_real, w_imag,
                   lin_b_real, lin_b_imag, b_real, b_imag):
    hidden_real = x_real @ w_real - x_imag @ w_imag + lin_b_real
    # hidden_imag path is dead code in the original module (bug); omitted.
    denom = jnp.sum(adj, axis=2, keepdims=True) + 1.0
    output_real = jnp.matmul(adj, hidden_real) / denom + b_real
    output_imag = output_real + b_imag          # reproduces the bug
    return jax.nn.relu(output_real), jax.nn.relu(output_imag)


if __name__ == "__main__":
    # NOTE: toy shape — pure launch/pipeline overhead; use xprof at production
    # shapes for any performance conclusions.
    B, N, F_in, F_out = 2, 16, 8, 32

    key = jax.random.PRNGKey(0)
    keys = jax.random.split(key, 9)

    x_real = jax.random.normal(keys[0], (B, N, F_in), jnp.float32)
    x_imag = jax.random.normal(keys[1], (B, N, F_in), jnp.float32)
    adj = jax.random.uniform(keys[2], (B, N, N), jnp.float32)   # non-negative adjacency

    w_real = xavier_uniform(keys[3], (F_in, F_out))
    w_imag = xavier_uniform(keys[4], (F_in, F_out))
    lin_b_real = bias_uniform(keys[5], F_out)
    lin_b_imag = bias_uniform(keys[6], F_out)
    b_real = bias_uniform(keys[7], F_out)
    b_imag = bias_uniform(keys[8], F_out)

    out_r, out_i = cgcn_forward(x_real, x_imag, adj, w_real, w_imag,
                                lin_b_real, lin_b_imag, b_real, b_imag)
    jax.block_until_ready((out_r, out_i))

    ref_r, ref_i = cgcn_reference(x_real, x_imag, adj, w_real, w_imag,
                                  lin_b_real, lin_b_imag, b_real, b_imag)
    # bf16 MXU inputs + approx reciprocal => relaxed tolerance vs the f32 reference.
    assert out_r.shape == ref_r.shape and out_i.shape == ref_i.shape
    assert jnp.allclose(out_r, ref_r, atol=5e-2, rtol=5e-2)
    assert jnp.allclose(out_i, ref_i, atol=5e-2, rtol=5e-2)

    print("KERNEL_OK")
</pallas_src>

<mosaic_0001>
module attributes {stable_mosaic.version = 11 : i64} {
  func.func @cgcn_kernel(%arg0: i32, %arg1: i32, %arg2: i32, %arg3: memref<1x16x16xbf16, #tpu.memory_space<vmem>>, %arg4: memref<1x16x16xbf16, #tpu.memory_space<vmem>>, %arg5: memref<1x16x1xf32, #tpu.memory_space<vmem>>, %arg6: memref<16x128xbf16, #tpu.memory_space<vmem>>, %arg7: memref<1x128xf32, #tpu.memory_space<vmem>>, %arg8: memref<1x128xf32, #tpu.memory_space<vmem>>, %arg9: memref<1x128xf32, #tpu.memory_space<vmem>>, %arg10: memref<1x16x128xf32, #tpu.memory_space<vmem>>, %arg11: memref<1x16x128xf32, #tpu.memory_space<vmem>>, %arg12: memref<16x128xf32, #tpu.memory_space<vmem>>) attributes {dimension_semantics = [#tpu.dimension_semantics<parallel>, #tpu.dimension_semantics<parallel>, #tpu.dimension_semantics<arbitrary>], iteration_bounds = array<i64: 2, 1, 1>, scalar_prefetch = 0 : i64, scratch_operands = 1 : i64, tpu.core_type = #tpu.core_type<tc>, window_params = [{transform_indices = @transform_0, window_bounds = array<i64: 1, 16, 16>}, {transform_indices = @transform_1, window_bounds = array<i64: 1, 16, 16>}, {transform_indices = @transform_2, window_bounds = array<i64: 1, 16, 1>}, {pipeline_mode = #tpu.pipeline_mode<synchronous>, transform_indices = @transform_3, window_bounds = array<i64: 16, 128>}, {pipeline_mode = #tpu.pipeline_mode<synchronous>, transform_indices = @transform_4, window_bounds = array<i64: 1, 128>}, {pipeline_mode = #tpu.pipeline_mode<synchronous>, transform_indices = @transform_5, window_bounds = array<i64: 1, 128>}, {pipeline_mode = #tpu.pipeline_mode<synchronous>, transform_indices = @transform_6, window_bounds = array<i64: 1, 128>}, {transform_indices = @transform_7, window_bounds = array<i64: 1, 16, 128>}, {transform_indices = @transform_8, window_bounds = array<i64: 1, 16, 128>}]} {
    %c0_i32 = arith.constant 0 : i32
    %0 = arith.cmpi eq, %arg2, %c0_i32 : i32
    %1 = arith.extui %0 : i1 to i32
    %c0_i32_0 = arith.constant 0 : i32
    %2 = arith.cmpi ne, %1, %c0_i32_0 : i32
    scf.if %2 {
      %cst_15 = arith.constant 0.000000e+00 : f32
      %17 = vector.broadcast %cst_15 : f32 to vector<16x128xf32>
      %c0_16 = arith.constant 0 : index
      %c0_17 = arith.constant 0 : index
      %18 = vector.load %arg12[%c0_16, %c0_17] : memref<16x128xf32, #tpu.memory_space<vmem>>, vector<16x128xf32>
      tpu.vector_store %arg12[%c0_16, %c0_17], %17 {strides = array<i32>} : memref<16x128xf32, #tpu.memory_space<vmem>>, vector<16x128xf32>,
    } else {
    }
    %c0 = arith.constant 0 : index
    %c0_1 = arith.constant 0 : index
    %c0_2 = arith.constant 0 : index
    %3 = vector.load %arg3[%c0, %c0_1, %c0_2] : memref<1x16x16xbf16, #tpu.memory_space<vmem>>, vector<1x16x16xbf16>
    %4 = vector.shape_cast %3 : vector<1x16x16xbf16> to vector<16x16xbf16>
    %c0_3 = arith.constant 0 : index
    %c0_4 = arith.constant 0 : index
    %5 = vector.load %arg6[%c0_3, %c0_4] : memref<16x128xbf16, #tpu.memory_space<vmem>>, vector<16x128xbf16>
    %cst = arith.constant dense<0.000000e+00> : vector<16x128xf32>
    %6 = tpu.matmul %4, %5, %cst {dimension_numbers = #tpu.dot_dimension_numbers<[1], [0], [0], [1], [0, 0, 1, 1], [], []>} : vector<16x16xbf16>, vector<16x128xbf16>, vector<16x128xf32> -> vector<16x128xf32>
    %c0_5 = arith.constant 0 : index
    %c0_6 = arith.constant 0 : index
    %7 = vector.load %arg12[%c0_5, %c0_6] : memref<16x128xf32, #tpu.memory_space<vmem>>, vector<16x128xf32>
    %c0_7 = arith.constant 0 : index
    %c0_8 = arith.constant 0 : index
    %c0_9 = arith.constant 0 : index
    %8 = vector.load %arg4[%c0_7, %c0_8, %c0_9] : memref<1x16x16xbf16, #tpu.memory_space<vmem>>, vector<1x16x16xbf16>
    %9 = vector.shape_cast %8 : vector<1x16x16xbf16> to vector<16x16xbf16>
    %10 = arith.truncf %6 : vector<16x128xf32> to vector<16x128xbf16>
    %cst_10 = arith.constant dense<0.000000e+00> : vector<16x128xf32>
    %11 = tpu.matmul %9, %10, %cst_10 {dimension_numbers = #tpu.dot_dimension_numbers<[1], [0], [0], [1], [0, 0, 1, 1], [], []>} : vector<16x16xbf16>, vector<16x128xbf16>, vector<16x128xf32> -> vector<16x128xf32>
    %12 = arith.addf %7, %11 : vector<16x128xf32>
    %c0_11 = arith.constant 0 : index
    %c0_12 = arith.constant 0 : index
    %13 = vector.load %arg12[%c0_11, %c0_12] : memref<16x128xf32, #tpu.memory_space<vmem>>, vector<16x128xf32>
    tpu.vector_store %arg12[%c0_11, %c0_12], %12 {strides = array<i32>} : memref<16x128xf32, #tpu.memory_space<vmem>>, vector<16x128xf32>,
    %c0_i32_13 = arith.constant 0 : i32
    %14 = arith.cmpi eq, %arg2, %c0_i32_13 : i32
    %15 = arith.extui %14 : i1 to i32
    %c0_i32_14 = arith.constant 0 : i32
    %16 = arith.cmpi ne, %15, %c0_i32_14 : i32
    scf.if %16 {
      %c0_15 = arith.constant 0 : index
      %c0_16 = arith.constant 0 : index
      %c0_17 = arith.constant 0 : index
      %17 = vector.load %arg5[%c0_15, %c0_16, %c0_17] : memref<1x16x1xf32, #tpu.memory_space<vmem>>, vector<1x16x1xf32>
      %18 = vector.shape_cast %17 : vector<1x16x1xf32> to vector<16x1xf32>
      %19 = tpu.reciprocal %18 {approx = true} : vector<16x1xf32> -> vector<16x1xf32>
      %c0_18 = arith.constant 0 : index
      %c0_19 = arith.constant 0 : index
      %20 = vector.load %arg12[%c0_18, %c0_19] : memref<16x128xf32, #tpu.memory_space<vmem>>, vector<16x128xf32>
      %cst_20 = arith.constant 1.000000e+00 : f32
      %21 = vector.broadcast %cst_20 : f32 to vector<16x1xf32>
      %22 = arith.subf %18, %21 : vector<16x1xf32>
      %c0_21 = arith.constant 0 : index
      %c0_22 = arith.constant 0 : index
      %23 = vector.load %arg7[%c0_21, %c0_22] : memref<1x128xf32, #tpu.memory_space<vmem>>, vector<1x128xf32>
      %24 = vector.broadcast %22 : vector<16x1xf32> to vector<16x128xf32>
      %25 = vector.broadcast %23 : vector<1x128xf32> to vector<16x128xf32>
      %26 = arith.mulf %24, %25 : vector<16x128xf32>
      %27 = arith.addf %20, %26 : vector<16x128xf32>
      %28 = vector.broadcast %19 : vector<16x1xf32> to vector<16x128xf32>
      %29 = arith.mulf %27, %28 : vector<16x128xf32>
      %c0_23 = arith.constant 0 : index
      %c0_24 = arith.constant 0 : index
      %30 = vector.load %arg8[%c0_23, %c0_24] : memref<1x128xf32, #tpu.memory_space<vmem>>, vector<1x128xf32>
      %31 = vector.broadcast %30 : vector<1x128xf32> to vector<16x128xf32>
      %32 = arith.addf %29, %31 : vector<16x128xf32>
      %cst_25 = arith.constant 0.000000e+00 : f32
      %33 = vector.broadcast %cst_25 : f32 to vector<16x128xf32>
      %34 = arith.maximumf %32, %33 : vector<16x128xf32>
      %c0_26 = arith.constant 0 : index
      %c0_27 = arith.constant 0 : index
      %c0_28 = arith.constant 0 : index
      %35 = vector.load %arg10[%c0_26, %c0_27, %c0_28] : memref<1x16x128xf32, #tpu.memory_space<vmem>>, vector<1x16x128xf32>
      %36 = vector.shape_cast %35 : vector<1x16x128xf32> to vector<16x128xf32>
      %37 = vector.shape_cast %34 : vector<16x128xf32> to vector<1x16x128xf32>
      tpu.vector_store %arg10[%c0_26, %c0_27, %c0_28], %37 {strides = array<i32>} : memref<1x16x128xf32, #tpu.memory_space<vmem>>, vector<1x16x128xf32>,
      %c0_29 = arith.constant 0 : index
      %c0_30 = arith.constant 0 : index
      %38 = vector.load %arg9[%c0_29, %c0_30] : memref<1x128xf32, #tpu.memory_space<vmem>>, vector<1x128xf32>
      %39 = vector.broadcast %38 : vector<1x128xf32> to vector<16x128xf32>
      %40 = arith.addf %32, %39 : vector<16x128xf32>
      %cst_31 = arith.constant 0.000000e+00 : f32
      %41 = vector.broadcast %cst_31 : f32 to vector<16x128xf32>
      %42 = arith.maximumf %40, %41 : vector<16x128xf32>
      %c0_32 = arith.constant 0 : index
      %c0_33 = arith.constant 0 : index
      %c0_34 = arith.constant 0 : index
      %43 = vector.load %arg11[%c0_32, %c0_33, %c0_34] : memref<1x16x128xf32, #tpu.memory_space<vmem>>, vector<1x16x128xf32>
      %44 = vector.shape_cast %43 : vector<1x16x128xf32> to vector<16x128xf32>
      %45 = vector.shape_cast %42 : vector<16x128xf32> to vector<1x16x128xf32>
      tpu.vector_store %arg11[%c0_32, %c0_33, %c0_34], %45 {strides = array<i32>} : memref<1x16x128xf32, #tpu.memory_space<vmem>>, vector<1x16x128xf32>,
    } else {
    }
    return
  }
  func.func @transform_0(%arg0: i32, %arg1: i32, %arg2: i32) -> (i32, i32, i32) {
    %c0_i32 = arith.constant 0 : i32
    %c0_i32_0 = arith.constant 0 : i32
    return %arg0, %arg2, %c0_i32 : i32, i32, i32
  }
  func.func @transform_1(%arg0: i32, %arg1: i32, %arg2: i32) -> (i32, i32, i32) {
    %c0_i32 = arith.constant 0 : i32
    return %arg0, %arg1, %arg2 : i32, i32, i32
  }
  func.func @transform_2(%arg0: i32, %arg1: i32, %arg2: i32) -> (i32, i32, i32) {
    %c0_i32 = arith.constant 0 : i32
    %c0_i32_0 = arith.constant 0 : i32
    return %arg0, %arg1, %c0_i32 : i32, i32, i32
  }
  func.func @transform_3(%arg0: i32, %arg1: i32, %arg2: i32) -> (i32, i32) {
    %c0_i32 = arith.constant 0 : i32
    %c0_i32_0 = arith.constant 0 : i32
    %c0_i32_1 = arith.constant 0 : i32
    return %c0_i32, %c0_i32_0 : i32, i32
  }
  func.func @transform_4(%arg0: i32, %arg1: i32, %arg2: i32) -> (i32, i32) {
    %c0_i32 = arith.constant 0 : i32
    %c0_i32_0 = arith.constant 0 : i32
    %c0_i32_1 = arith.constant 0 : i32
    return %c0_i32, %c0_i32_0 : i32, i32
  }
  func.func @transform_5(%arg0: i32, %arg1: i32, %arg2: i32) -> (i32, i32) {
    %c0_i32 = arith.constant 0 : i32
    %c0_i32_0 = arith.constant 0 : i32
    %c0_i32_1 = arith.constant 0 : i32
    return %c0_i32, %c0_i32_0 : i32, i32
  }
  func.func @transform_6(%arg0: i32, %arg1: i32, %arg2: i32) -> (i32, i32) {
    %c0_i32 = arith.constant 0 : i32
    %c0_i32_0 = arith.constant 0 : i32
    %c0_i32_1 = arith.constant 0 : i32
    return %c0_i32, %c0_i32_0 : i32, i32
  }
  func.func @transform_7(%arg0: i32, %arg1: i32, %arg2: i32) -> (i32, i32, i32) {
    %c0_i32 = arith.constant 0 : i32
    %c0_i32_0 = arith.constant 0 : i32
    return %arg0, %arg1, %c0_i32 : i32, i32, i32
  }
  func.func @transform_8(%arg0: i32, %arg1: i32, %arg2: i32) -> (i32, i32, i32) {
    %c0_i32 = arith.constant 0 : i32
    %c0_i32_0 = arith.constant 0 : i32
    return %arg0, %arg1, %c0_i32 : i32, i32, i32
  }
}

</mosaic_0001>

<llo_original>
// kernel: tpu_custom_call.1
$region0: #{tpu_custom_call.1}
  #allocation0 [shape = 'u32[]', space=smem, size = 0x4, offset = 0x4, fixed_abs, tag = 'smem constant byte address 0x4 - core index']
  #allocation1 [shape = 'u32[144,128]{1,0:T(1,128)}', space=vmem, size = 0x12000, scoped, tag = 'internal scratch']
  #allocation2 [shape = 'f32[16,128]{1,0:T(8,128)}', space=vmem, size = 0x2000, scoped, tag = 'scratch operand']
  %s0 = inlined_call_operand.vmem [shape: bf16[2,16,16], index: 0, kind: input, shape index: {}]
  %s1 = inlined_call_operand.vmem [shape: bf16[2,16,16], index: 1, kind: input, shape index: {}]
  %s2 = inlined_call_operand.vmem [shape: f32[2,16,1], index: 2, kind: input, shape index: {}]
  %s3 = inlined_call_operand.hbm [shape: bf16[16,128], index: 3, kind: input, shape index: {}]
  %s4 = inlined_call_operand.vmem [shape: f32[1,128], index: 4, kind: input, shape index: {}]
  %s5 = inlined_call_operand.vmem [shape: f32[1,128], index: 5, kind: input, shape index: {}]
  %s6 = inlined_call_operand.vmem [shape: f32[1,128], index: 6, kind: input, shape index: {}]
  %s7 = inlined_call_operand.hbm [shape: f32[2,16,128], index: 7, kind: output, shape index: {0}]
  %s8 = inlined_call_operand.hbm [shape: f32[2,16,128], index: 8, kind: output, shape index: {1}]
  %9 = xla_tuple %s7, %s8
  %s10 = sld [smem:[#allocation0]]
  $region81: #{tpu_custom_call.1} parent=0
    _
  %s12 = ssub.s32 1, %s10
  %s13 = scalar_select 0, %s12, %s10
  $region1: #{tpu_custom_call.1} parent=0
    #allocation3 [shape = 'u8[4096]{0}', space=vmem, size = 0x1000, scoped, tag = 'input window, operand 3, single buffered']
    #allocation4 [shape = 's32[2]{0}', space=sflag, size = 0x8, scoped, tag = 'scoped memory for tpu_custom_call.1']
    #allocation5 [shape = 's32[2]{0}', space=sflag, size = 0x8, scoped, tag = 'scoped memory for tpu_custom_call.1']
    #allocation6 [shape = 'u8[16384]{0}', space=vmem, size = 0x4000, scoped, tag = 'output window, operand 0']
    #allocation7 [shape = 'u8[16384]{0}', space=vmem, size = 0x4000, scoped, tag = 'output window, operand 1']
    #allocation8 [shape = 's32[2]{0}', space=sflag, size = 0x8, scoped, tag = 'scoped memory for tpu_custom_call.1']
    %14 = vsyncpa [#allocation4], 0
    %15 = vsyncpa [#allocation5], 0
    %s16 = scalar_lea.sflag [#allocation5], 1
    %17 = vsyncpa %s16, 0
    %18 = vsyncpa [#allocation8], 0
    %s19 = scalar_lea.sflag [#allocation8], 1
    %20 = vsyncpa %s19, 0
    loop: start=0, step=1, limit=4
    $region2: #{tpu_custom_call.1} parent=1 // loop_pre_header
      _
    $region3: #{tpu_custom_call.1} parent=1 // loop_header
      %s22 = sphi 0, %s26
      %p23 = scmp.ge.s32.totalorder %s22, 4
      %s29 = sphi 0, %s48
      %s30 = sphi 0, %s44
      %s31 = sphi 0, %s40
      %s32 = sphi 0, %s29
      %s33 = sphi 0, %s30
      %s34 = sphi 0, %s31
      %s35 = sphi 0, %s32
      %s36 = sphi 0, %s33
      %s37 = sphi 0, %s34
      %s53 = sphi 0, %s55
      %s56 = sphi 0, %s53
      %s57 = sphi 0, %s56
      %s73 = sphi 0, %s57
      %s83 = sphi 0, %s85
      %s86 = sphi 0, %s83
      %s87 = sphi 0, %s86
      %s103 = sphi 0, %s87
      %s111 = sphi 0, %s113
      %s114 = sphi 0, %s111
      %s115 = sphi 0, %s114
      %s131 = sphi 0, %s115
      %s135 = sphi 0, %s135
      %s137 = sphi 0, %s135
      %s138 = sphi 0, %s137
      %s152 = sphi 0, %s138
      %s156 = sphi 0, %s156
      %s158 = sphi 0, %s156
      %s159 = sphi 0, %s158
      %s173 = sphi 0, %s159
      %s177 = sphi 0, %s177
      %s179 = sphi 0, %s177
      %s180 = sphi 0, %s179
      %s194 = sphi 0, %s180
      %s198 = sphi 0, %s198
      %s200 = sphi 0, %s198
      %s201 = sphi 0, %s200
      %s215 = sphi 0, %s201
      %s223 = sphi 0, %s225
      %s226 = sphi 0, %s223
      %s227 = sphi 0, %s226
      %s243 = sphi 0, %s227
      %s251 = sphi 0, %s253
      %s254 = sphi 0, %s251
      %s255 = sphi 0, %s254
      %s271 = sphi 0, %s255
    $region4: #{tpu_custom_call.1} parent=1 // loop_header_branch
      %25 = sbr.rel (%p23) target = $region8
    $region5: #{tpu_custom_call.1} parent=1 // loop_body
      %s27 = ssub.s32 %s22, 1
      %s28 = ssub.s32 %s22, 2
      %s38 = sadd.s32 1, %s31
      %p39 = scmp.ge.s32.totalorder %s38, 1
      %s40 = scalar_select %p39, 0, %s38
      %s41 = sadd.s32 1, %s30
      %s42 = scalar_select %p39, %s41, %s30
      %p43 = scmp.ge.s32.totalorder %s42, 1
      %s44 = scalar_select %p43, 0, %s42
      %s45 = sadd.s32 1, %s29
      %s46 = scalar_select %p43, %s45, %s29
      %p47 = scmp.ge.s32.totalorder %s46, 2
      %s48 = scalar_select %p47, 0, %s46
      %s49 = ssub.s32 %s29, %s48
      %s50 = ssub.s32 %s31, %s40
      %s51 = sor.u32 %s49, %s50
      %p52 = scmp.eq.s32.totalorder %s51, 0
      %s54 = sadd.s32 %s53, 1
      %s55 = scalar_select %p52, %s53, %s54
      %p58 = pneg %p52
      %p59 = scmp.eq.s32.totalorder %s22, 1
      %p60 = por %p58, %p59
      %p61 = scmp.ne.s32.totalorder %s53, %s56
      %p62 = scmp.eq.s32.totalorder %s22, 0
      %p63 = por %p61, %p62
      %p64 = scmp.ne.s32.totalorder %s53, %s56
      %p65 = scmp.eq.s32.totalorder %s27, 1
      %p66 = por %p64, %p65
      %p67 = scmp.ne.s32.totalorder %s56, %s57
      %p68 = scmp.eq.s32.totalorder %s27, 0
      %p69 = por %p67, %p68
      %p70 = scmp.ne.s32.totalorder %s56, %s57
      %p71 = scmp.eq.s32.totalorder %s28, 1
      %p72 = por %p70, %p71
      %p74 = scmp.ne.s32.totalorder %s57, %s73
      %p75 = scmp.eq.s32.totalorder %s28, 0
      %p76 = por %p74, %p75
      %s77 = ssub.s32 %s29, %s48
      %s78 = ssub.s32 %s30, %s44
      %s79 = sor.u32 %s77, %s78
      %s80 = ssub.s32 %s31, %s40
      %s81 = sor.u32 %s79, %s80
      %p82 = scmp.eq.s32.totalorder %s81, 0
      %s84 = sadd.s32 %s83, 1
      %s85 = scalar_select %p82, %s83, %s84
      %p88 = pneg %p82
      %p89 = scmp.eq.s32.totalorder %s22, 1
      %p90 = por %p88, %p89
      %p91 = scmp.ne.s32.totalorder %s83, %s86
      %p92 = scmp.eq.s32.totalorder %s22, 0
      %p93 = por %p91, %p92
      %p94 = scmp.ne.s32.totalorder %s83, %s86
      %p95 = scmp.eq.s32.totalorder %s27, 1
      %p96 = por %p94, %p95
      %p97 = scmp.ne.s32.totalorder %s86, %s87
      %p98 = scmp.eq.s32.totalorder %s27, 0
      %p99 = por %p97, %p98
      %p100 = scmp.ne.s32.totalorder %s86, %s87
      %p101 = scmp.eq.s32.totalorder %s28, 1
      %p102 = por %p100, %p101
      %p104 = scmp.ne.s32.totalorder %s87, %s103
      %p105 = scmp.eq.s32.totalorder %s28, 0
      %p106 = por %p104, %p105
      %s107 = ssub.s32 %s29, %s48
      %s108 = ssub.s32 %s30, %s44
      %s109 = sor.u32 %s107, %s108
      %p110 = scmp.eq.s32.totalorder %s109, 0
      %s112 = sadd.s32 %s111, 1
      %s113 = scalar_select %p110, %s111, %s112
      %p116 = pneg %p110
      %p117 = scmp.eq.s32.totalorder %s22, 1
      %p118 = por %p116, %p117
      %p119 = scmp.ne.s32.totalorder %s111, %s114
      %p120 = scmp.eq.s32.totalorder %s22, 0
      %p121 = por %p119, %p120
      %p122 = scmp.ne.s32.totalorder %s111, %s114
      %p123 = scmp.eq.s32.totalorder %s27, 1
      %p124 = por %p122, %p123
      %p125 = scmp.ne.s32.totalorder %s114, %s115
      %p126 = scmp.eq.s32.totalorder %s27, 0
      %p127 = por %p125, %p126
      %p128 = scmp.ne.s32.totalorder %s114, %s115
      %p129 = scmp.eq.s32.totalorder %s28, 1
      %p130 = por %p128, %p129
      %p132 = scmp.ne.s32.totalorder %s115, %s131
      %p133 = scmp.eq.s32.totalorder %s28, 0
      %p134 = por %p132, %p133
      %s136 = sadd.s32 %s135, 1
      %p139 = scmp.eq.s32.totalorder %s22, 1
      %p140 = scmp.ne.s32.totalorder %s135, %s137
      %p141 = scmp.eq.s32.totalorder %s22, 0
      %p142 = por %p140, %p141
      %p143 = scmp.ne.s32.totalorder %s135, %s137
      %p144 = scmp.eq.s32.totalorder %s27, 1
      %p145 = por %p143, %p144
      %p146 = scmp.ne.s32.totalorder %s137, %s138
      %p147 = scmp.eq.s32.totalorder %s27, 0
      %p148 = por %p146, %p147
      %p149 = scmp.ne.s32.totalorder %s137, %s138
      %p150 = scmp.eq.s32.totalorder %s28, 1
      %p151 = por %p149, %p150
      %p153 = scmp.ne.s32.totalorder %s138, %s152
      %p154 = scmp.eq.s32.totalorder %s28, 0
      %p155 = por %p153, %p154
      %s157 = sadd.s32 %s156, 1
      %p160 = scmp.eq.s32.totalorder %s22, 1
      %p161 = scmp.ne.s32.totalorder %s156, %s158
      %p162 = scmp.eq.s32.totalorder %s22, 0
      %p163 = por %p161, %p162
      %p164 = scmp.ne.s32.totalorder %s156, %s158
      %p165 = scmp.eq.s32.totalorder %s27, 1
      %p166 = por %p164, %p165
      %p167 = scmp.ne.s32.totalorder %s158, %s159
      %p168 = scmp.eq.s32.totalorder %s27, 0
      %p169 = por %p167, %p168
      %p170 = scmp.ne.s32.totalorder %s158, %s159
      %p171 = scmp.eq.s32.totalorder %s28, 1
      %p172 = por %p170, %p171
      %p174 = scmp.ne.s32.totalorder %s159, %s173
      %p175 = scmp.eq.s32.totalorder %s28, 0
      %p176 = por %p174, %p175
      %s178 = sadd.s32 %s177, 1
      %p181 = scmp.eq.s32.totalorder %s22, 1
      %p182 = scmp.ne.s32.totalorder %s177, %s179
      %p183 = scmp.eq.s32.totalorder %s22, 0
      %p184 = por %p182, %p183
      %p185 = scmp.ne.s32.totalorder %s177, %s179
      %p186 = scmp.eq.s32.totalorder %s27, 1
      %p187 = por %p185, %p186
      %p188 = scmp.ne.s32.totalorder %s179, %s180
      %p189 = scmp.eq.s32.totalorder %s27, 0
      %p190 = por %p188, %p189
      %p191 = scmp.ne.s32.totalorder %s179, %s180
      %p192 = scmp.eq.s32.totalorder %s28, 1
      %p193 = por %p191, %p192
      %p195 = scmp.ne.s32.totalorder %s180, %s194
      %p196 = scmp.eq.s32.totalorder %s28, 0
      %p197 = por %p195, %p196
      %s199 = sadd.s32 %s198, 1
      %p202 = scmp.eq.s32.totalorder %s22, 1
      %p203 = scmp.ne.s32.totalorder %s198, %s200
      %p204 = scmp.eq.s32.totalorder %s22, 0
      %p205 = por %p203, %p204
      %p206 = scmp.ne.s32.totalorder %s198, %s200
      %p207 = scmp.eq.s32.totalorder %s27, 1
      %p208 = por %p206, %p207
      %p209 = scmp.ne.s32.totalorder %s200, %s201
      %p210 = scmp.eq.s32.totalorder %s27, 0
      %p211 = por %p209, %p210
      %p212 = scmp.ne.s32.totalorder %s200, %s201
      %p213 = scmp.eq.s32.totalorder %s28, 1
      %p214 = por %p212, %p213
      %p216 = scmp.ne.s32.totalorder %s201, %s215
      %p217 = scmp.eq.s32.totalorder %s28, 0
      %p218 = por %p216, %p217
      %s219 = ssub.s32 %s29, %s48
      %s220 = ssub.s32 %s30, %s44
      %s221 = sor.u32 %s219, %s220
      %p222 = scmp.eq.s32.totalorder %s221, 0
      %s224 = sadd.s32 %s223, 1
      %s225 = scalar_select %p222, %s223, %s224
      %p228 = pneg %p222
      %p229 = scmp.eq.s32.totalorder %s22, 1
      %p230 = por %p228, %p229
      %p231 = scmp.ne.s32.totalorder %s223, %s226
      %p232 = scmp.eq.s32.totalorder %s22, 0
      %p233 = por %p231, %p232
      %p234 = scmp.ne.s32.totalorder %s223, %s226
      %p235 = scmp.eq.s32.totalorder %s27, 1
      %p236 = por %p234, %p235
      %p237 = scmp.ne.s32.totalorder %s226, %s227
      %p238 = scmp.eq.s32.totalorder %s27, 0
      %p239 = por %p237, %p238
      %p240 = scmp.ne.s32.totalorder %s226, %s227
      %p241 = scmp.eq.s32.totalorder %s28, 1
      %p242 = por %p240, %p241
      %p244 = scmp.ne.s32.totalorder %s227, %s243
      %p245 = scmp.eq.s32.totalorder %s28, 0
      %p246 = por %p244, %p245
      %s247 = ssub.s32 %s29, %s48
      %s248 = ssub.s32 %s30, %s44
      %s249 = sor.u32 %s247, %s248
      %p250 = scmp.eq.s32.totalorder %s249, 0
      %s252 = sadd.s32 %s251, 1
      %s253 = scalar_select %p250, %s251, %s252
      %p256 = pneg %p250
      %p257 = scmp.eq.s32.totalorder %s22, 1
      %p258 = por %p256, %p257
      %p259 = scmp.ne.s32.totalorder %s251, %s254
      %p260 = scmp.eq.s32.totalorder %s22, 0
      %p261 = por %p259, %p260
      %p262 = scmp.ne.s32.totalorder %s251, %s254
      %p263 = scmp.eq.s32.totalorder %s27, 1
      %p264 = por %p262, %p263
      %p265 = scmp.ne.s32.totalorder %s254, %s255
      %p266 = scmp.eq.s32.totalorder %s27, 0
      %p267 = por %p265, %p266
      %p268 = scmp.ne.s32.totalorder %s254, %s255
      %p269 = scmp.eq.s32.totalorder %s28, 1
      %p270 = por %p268, %p269
      %p272 = scmp.ne.s32.totalorder %s255, %s271
      %p273 = scmp.eq.s32.totalorder %s28, 0
      %p274 = por %p272, %p273
      %p275 = scmp.le.s32.totalorder 1, %s22
      %p276 = scmp.lt.s32.totalorder %s22, 3
      %p277 = pnand %p275, %p276
      %p278 = pneg %p277
      // Predicated region
      $region9: #{tpu_custom_call.1} parent=5 // pred_check
        _
      $region10: #{tpu_custom_call.1} parent=5 // pred_check_branch
        %280 = sbr.rel (%p277) target = $region12
      $region11: #{tpu_custom_call.1} parent=5 // pred_region
        %s281 = ssub.s32 %s22, 1
        // Predicated region
        $region13: #{tpu_custom_call.1} parent=11 // pred_check
          %p282 = pneg %p148
        $region14: #{tpu_custom_call.1} parent=11 // pred_check_branch
          %284 = sbr.rel (%p282) target = $region16
        $region15: #{tpu_custom_call.1} parent=11 // pred_region
          %s286 = ssub.s32 128, 128
          %287 = vsyncadd [#allocation4], %s286
          %s288 = sshll.u32 [#allocation3], 4
          %s289 = int_to_ptr.vmem [resolvable:$true] %s288
          %294 = dma.hbm_to_vmem [thread:$0]  %s3, 128, %s289, [#allocation4], 64, 64, 4
        $region16: #{tpu_custom_call.1} parent=11 // pred_fallthru
          _
        // Predicated region
        $region17: #{tpu_custom_call.1} parent=11 // pred_check
          %p295 = pneg %p169
        $region18: #{tpu_custom_call.1} parent=11 // pred_check_branch
          %297 = sbr.rel (%p295) target = $region20
        $region19: #{tpu_custom_call.1} parent=11 // pred_region
          _
        $region20: #{tpu_custom_call.1} parent=11 // pred_fallthru
          _
        // Predicated region
        $region21: #{tpu_custom_call.1} parent=11 // pred_check
          %p298 = pneg %p190
        $region22: #{tpu_custom_call.1} parent=11 // pred_check_branch
          %300 = sbr.rel (%p298) target = $region24
        $region23: #{tpu_custom_call.1} parent=11 // pred_region
          _
        $region24: #{tpu_custom_call.1} parent=11 // pred_fallthru
          _
        // Predicated region
        $region25: #{tpu_custom_call.1} parent=11 // pred_check
          %p301 = pneg %p211
        $region26: #{tpu_custom_call.1} parent=11 // pred_check_branch
          %303 = sbr.rel (%p301) target = $region28
        $region27: #{tpu_custom_call.1} parent=11 // pred_region
          _
        $region28: #{tpu_custom_call.1} parent=11 // pred_fallthru
          _
      $region12: #{tpu_custom_call.1} parent=5 // pred_fallthru
        _
      %p304 = scmp.lt.s32.totalorder %s22, 2
      // Predicated region
      $region29: #{tpu_custom_call.1} parent=5 // pred_check
        %p305 = pneg %p304
      $region30: #{tpu_custom_call.1} parent=5 // pred_check_branch
        %307 = sbr.rel (%p305) target = $region32
      $region31: #{tpu_custom_call.1} parent=5 // pred_region
        // Predicated region
        $region33: #{tpu_custom_call.1} parent=31 // pred_check
          %p308 = pneg %p63
        $region34: #{tpu_custom_call.1} parent=31 // pred_check_branch
          %310 = sbr.rel (%p308) target = $region36
        $region35: #{tpu_custom_call.1} parent=31 // pred_region
          %s311 = smul.u32 2, %s31
          %p312 = scmp.lt.s32.totalorder %s29, 1
          %s313 = scalar_select %p312, %s29, 1
          %p314 = scmp.lt.s32.totalorder %s311, 1
          %s315 = scalar_select %p314, %s311, 1
          %s316 = smul.addr %s313, 2
          %s317 = sadd.s32 %s315, %s316
          %s318 = smul.addr %s317, 4
          %s319 = scalar_lea.vmem %s0, %s318
          %s320 = smul.u32 2, %s31
        $region36: #{tpu_custom_call.1} parent=31 // pred_fallthru
          _
        // Predicated region
        $region37: #{tpu_custom_call.1} parent=31 // pred_check
          %p321 = pneg %p93
        $region38: #{tpu_custom_call.1} parent=31 // pred_check_branch
          %323 = sbr.rel (%p321) target = $region40
        $region39: #{tpu_custom_call.1} parent=31 // pred_region
          %s324 = smul.u32 2, %s30
          %p325 = scmp.lt.s32.totalorder %s29, 1
          %s326 = scalar_select %p325, %s29, 1
          %p327 = scmp.lt.s32.totalorder %s324, 1
          %s328 = scalar_select %p327, %s324, 1
          %p329 = scmp.lt.s32.totalorder %s31, 0
          %s330 = scalar_select %p329, %s31, 0
          %s331 = sadd.s32 %s330, %s328
          %s332 = smul.addr %s326, 2
          %s333 = sadd.s32 %s331, %s332
          %s334 = smul.addr %s333, 4
          %s335 = scalar_lea.vmem %s1, %s334
          %s336 = smul.u32 2, %s30
        $region40: #{tpu_custom_call.1} parent=31 // pred_fallthru
          _
        // Predicated region
        $region41: #{tpu_custom_call.1} parent=31 // pred_check
          %p337 = pneg %p121
        $region42: #{tpu_custom_call.1} parent=31 // pred_check_branch
          %339 = sbr.rel (%p337) target = $region44
        $region43: #{tpu_custom_call.1} parent=31 // pred_region
          %s340 = smul.u32 2, %s30
          %p341 = scmp.lt.s32.totalorder %s29, 1
          %s342 = scalar_select %p341, %s29, 1
          %p343 = scmp.lt.s32.totalorder %s340, 1
          %s344 = scalar_select %p343, %s340, 1
          %s345 = smul.addr %s342, 2
          %s346 = sadd.s32 %s344, %s345
          %s347 = smul.addr %s346, 8
          %s348 = scalar_lea.vmem %s2, %s347
          %s349 = smul.u32 2, %s30
        $region44: #{tpu_custom_call.1} parent=31 // pred_fallthru
          _
      $region32: #{tpu_custom_call.1} parent=5 // pred_fallthru
        _
      %p350 = scmp.le.s32.totalorder 1, %s22
      %p351 = scmp.lt.s32.totalorder %s22, 3
      %p352 = pnand %p350, %p351
      %p353 = pneg %p352
      // Predicated region
      $region45: #{tpu_custom_call.1} parent=5 // pred_check
        _
      $region46: #{tpu_custom_call.1} parent=5 // pred_check_branch
        %355 = sbr.rel (%p352) target = $region48
      $region47: #{tpu_custom_call.1} parent=5 // pred_region
        %s356 = ssub.s32 %s22, 1
        // Predicated region
        $region49: #{tpu_custom_call.1} parent=47 // pred_check
          %p357 = pneg %p148
        $region50: #{tpu_custom_call.1} parent=47 // pred_check_branch
          %359 = sbr.rel (%p357) target = $region52
        $region51: #{tpu_custom_call.1} parent=47 // pred_region
          %360 = dma.done [#allocation4], 128
        $region52: #{tpu_custom_call.1} parent=47 // pred_fallthru
          _
        %s361 = smul.u32 2, %s34
        %p362 = scmp.lt.s32.totalorder %s32, 1
        %s363 = scalar_select %p362, %s32, 1
        %p364 = scmp.lt.s32.totalorder %s361, 1
        %s365 = scalar_select %p364, %s361, 1
        %s366 = smul.addr %s363, 2
        %s367 = sadd.s32 %s365, %s366
        %s368 = smul.addr %s367, 4
        %s369 = scalar_lea.vmem %s0, %s368
        %p370 = pneg %p69
        %p371 = pneg %p66
        %s372 = smul.u32 2, %s33
        %p373 = scmp.lt.s32.totalorder %s32, 1
        %s374 = scalar_select %p373, %s32, 1
        %p375 = scmp.lt.s32.totalorder %s372, 1
        %s376 = scalar_select %p375, %s372, 1
        %p377 = scmp.lt.s32.totalorder %s34, 0
        %s378 = scalar_select %p377, %s34, 0
        %s379 = sadd.s32 %s378, %s376
        %s380 = smul.addr %s374, 2
        %s381 = sadd.s32 %s379, %s380
        %s382 = smul.addr %s381, 4
        %s383 = scalar_lea.vmem %s1, %s382
        %p384 = pneg %p99
        %p385 = pneg %p96
        %s386 = smul.u32 2, %s33
        %p387 = scmp.lt.s32.totalorder %s32, 1
        %s388 = scalar_select %p387, %s32, 1
        %p389 = scmp.lt.s32.totalorder %s386, 1
        %s390 = scalar_select %p389, %s386, 1
        %s391 = smul.addr %s388, 2
        %s392 = sadd.s32 %s390, %s391
        %s393 = smul.addr %s392, 8
        %s394 = scalar_lea.vmem %s2, %s393
        %p395 = pneg %p127
        %p396 = pneg %p124
        %p397 = pneg %p148
        %p398 = pneg %p145
        %p399 = pneg %p169
        %p400 = pneg %p166
        %p401 = pneg %p190
        %p402 = pneg %p187
        %p403 = pneg %p211
        %p404 = pneg %p208
        %p405 = pneg %p239
        %p406 = pneg %p236
        %s407 = sand.u32 %s226, 1
        %s408 = scalar_lea.sflag [#allocation5], %s407
        %s409 = sand.u32 %s226, 1
        %s410 = smul.addr %s409, 16
        %s411 = scalar_lea.vmem [#allocation6], %s410
        %p412 = pneg %p267
        %p413 = pneg %p264
        %s414 = sand.u32 %s254, 1
        %s415 = scalar_lea.sflag [#allocation8], %s414
        %s416 = sand.u32 %s254, 1
        %s417 = smul.addr %s416, 16
        %s418 = scalar_lea.vmem [#allocation7], %s417
        %s419 = smul.u32 2, %s34
        %p420 = scmp.lt.s32.totalorder %s32, 1
        %s421 = scalar_select %p420, %s32, 1
        %p422 = scmp.lt.s32.totalorder %s419, 1
        %s423 = scalar_select %p422, %s419, 1
        %s424 = smul.addr %s421, 2
        %s425 = sadd.s32 %s423, %s424
        %s426 = smul.addr %s425, 4
        %s427 = scalar_lea.vmem %s0, %s426
        %s428 = smul.u32 2, %s34
        %s429 = smul.u32 2, %s33
        %p430 = scmp.lt.s32.totalorder %s32, 1
        %s431 = scalar_select %p430, %s32, 1
        %p432 = scmp.lt.s32.totalorder %s429, 1
        %s433 = scalar_select %p432, %s429, 1
        %p434 = scmp.lt.s32.totalorder %s34, 0
        %s435 = scalar_select %p434, %s34, 0
        %s436 = sadd.s32 %s435, %s433
        %s437 = smul.addr %s431, 2
        %s438 = sadd.s32 %s436, %s437
        %s439 = smul.addr %s438, 4
        %s440 = scalar_lea.vmem %s1, %s439
        %s441 = smul.u32 2, %s33
        %s442 = smul.u32 2, %s33
        %p443 = scmp.lt.s32.totalorder %s32, 1
        %s444 = scalar_select %p443, %s32, 1
        %p445 = scmp.lt.s32.totalorder %s442, 1
        %s446 = scalar_select %p445, %s442, 1
        %s447 = smul.addr %s444, 2
        %s448 = sadd.s32 %s446, %s447
        %s449 = smul.addr %s448, 8
        %s450 = scalar_lea.vmem %s2, %s449
        %s451 = smul.u32 2, %s33
        %s452 = smul.u32 2, %s33
        %s453 = smul.u32 2, %s33
        %p455 = scmp.eq.s32.totalorder %s34, 0
        // Predicated region
        $region53: #{tpu_custom_call.1} parent=47 // pred_check
          %p456 = pneg %p455
        $region54: #{tpu_custom_call.1} parent=47 // pred_check_branch
          %458 = sbr.rel (%p456) target = $region56
        $region55: #{tpu_custom_call.1} parent=47 // pred_region
          %459 = vst [vmem:[#allocation2] sm:$0xff] 0.0
          %460 = vst [vmem:[#allocation2 + $0x8] sm:$0xff] 0.0
        $region56: #{tpu_custom_call.1} parent=47 // pred_fallthru
          _
        %v461 = vld [vmem:[%s427] sm:$0xf]
        %v462 = vld [vmem:[%s427 + $0x4] sm:$0xf]
        %v463 = vld [vmem:[#allocation3] sm:$0xf]
        %v464 = vld [vmem:[#allocation3 + $0x4] sm:$0xf]
        %v467 = vunpack.c.l.b16 %v461
        %v468 = vunpack.c.l.b16 %v462
        %v469 = vpack.c.b16 %v468, %v467
        %v472 = vunpack.c.l.b16 %v463
        %v473 = vunpack.c.l.b16 %v464
        %v474 = vpack.c.b16 %v473, %v472
        %vm476 = vcmask 130048
        %v478 = vsel %vm476, %v469, 0
        %480 = vmatprep.subr.bf16.mxu0 0
        %481 = vmatpush1.bf16.msra.mxu0 0
        %482 = vmatprep.subr.bf16.mxu0 0
        %483 = vmatpush1.bf16.msra.mxu0 0
        %484 = vmatprep.subr.bf16.mxu0 0
        %485 = vmatpush1.bf16.msra.mxu0 0
        %486 = vmatprep.subr.bf16.mxu0 0
        %487 = vmatpush1.bf16.msra.mxu0 0
        %488 = vmatprep.subr.bf16.mxu0 0
        %489 = vmatpush1.bf16.msra.mxu0 0
        %490 = vmatprep.subr.bf16.mxu0 0
        %491 = vmatpush1.bf16.msra.mxu0 0
        %492 = vmatprep.subr.bf16.mxu0 0
        %493 = vmatpush1.bf16.msra.mxu0 0
        %494 = vmatprep.subr.bf16.mxu0 0
        %495 = vmatpush1.bf16.msra.mxu0 %v474
        %496 = vmatprep.subr.bf16.mxu0 0
        %497 = vmatpush2.bf16.msra.mxu0 0
        %498 = vmatprep.subr.bf16.mxu0 0
        %499 = vmatpush2.bf16.msra.mxu0 0
        %500 = vmatprep.subr.bf16.mxu0 0
        %501 = vmatpush2.bf16.msra.mxu0 0
        %502 = vmatprep.subr.bf16.mxu0 0
        %503 = vmatpush2.bf16.msra.mxu0 0
        %504 = vmatprep.subr.bf16.mxu0 0
        %505 = vmatpush2.bf16.msra.mxu0 0
        %506 = vmatprep.subr.bf16.mxu0 0
        %507 = vmatpush2.bf16.msra.mxu0 0
        %508 = vmatprep.subr.bf16.mxu0 0
        %509 = vmatpush2.bf16.msra.mxu0 0
        %510 = vmatprep.subr.bf16.mxu0 0
        %511 = vmatpush2.bf16.msra.mxu0 0
        %512 = vmatprep.mubr.bf16.mxu0 0
        %513 = vmatmul.mubr.bf16.gmra.mxu0 %v478
        %v514 = vpop.f32.mrf.mxu0
        %v515 = vadd.f32 0.0, %v514
        %v516 = vpop.f32.mrf.mxu0
        %v517 = vpop.f32.mrf.mxu0
        %v518 = vadd.f32 0.0, %v517
        %v519 = vpop.f32.mrf.mxu0
        %520 = vdwg.mxu0
        %v521 = vld [vmem:[#allocation2] sm:$0xff]
        %v522 = vld [vmem:[#allocation2 + $0x8] sm:$0xff]
        %v523 = vld [vmem:[%s440] sm:$0xf]
        %v524 = vld [vmem:[%s440 + $0x4] sm:$0xf]
        %v525 = vpack.c.bf16 %v518, %v515
        %v528 = vunpack.c.l.b16 %v523
        %v529 = vunpack.c.l.b16 %v524
        %v530 = vpack.c.b16 %v529, %v528
        %v532 = vsel %vm476, %v530, 0
        %534 = vmatprep.subr.bf16.mxu0 0
        %535 = vmatpush1.bf16.msra.mxu0 0
        %536 = vmatprep.subr.bf16.mxu0 0
        %537 = vmatpush1.bf16.msra.mxu0 0
        %538 = vmatprep.subr.bf16.mxu0 0
        %539 = vmatpush1.bf16.msra.mxu0 0
        %540 = vmatprep.subr.bf16.mxu0 0
        %541 = vmatpush1.bf16.msra.mxu0 0
        %542 = vmatprep.subr.bf16.mxu0 0
        %543 = vmatpush1.bf16.msra.mxu0 0
        %544 = vmatprep.subr.bf16.mxu0 0
        %545 = vmatpush1.bf16.msra.mxu0 0
        %546 = vmatprep.subr.bf16.mxu0 0
        %547 = vmatpush1.bf16.msra.mxu0 0
        %548 = vmatprep.subr.bf16.mxu0 0
        %549 = vmatpush1.bf16.msra.mxu0 %v525
        %550 = vmatprep.subr.bf16.mxu0 0
        %551 = vmatpush2.bf16.msra.mxu0 0
        %552 = vmatprep.subr.bf16.mxu0 0
        %553 = vmatpush2.bf16.msra.mxu0 0
        %554 = vmatprep.subr.bf16.mxu0 0
        %555 = vmatpush2.bf16.msra.mxu0 0
        %556 = vmatprep.subr.bf16.mxu0 0
        %557 = vmatpush2.bf16.msra.mxu0 0
        %558 = vmatprep.subr.bf16.mxu0 0
        %559 = vmatpush2.bf16.msra.mxu0 0
        %560 = vmatprep.subr.bf16.mxu0 0
        %561 = vmatpush2.bf16.msra.mxu0 0
        %562 = vmatprep.subr.bf16.mxu0 0
        %563 = vmatpush2.bf16.msra.mxu0 0
        %564 = vmatprep.subr.bf16.mxu0 0
        %565 = vmatpush2.bf16.msra.mxu0 0
        %566 = vmatprep.mubr.bf16.mxu0 0
        %567 = vmatmul.mubr.bf16.gmra.mxu0 %v532
        %v568 = vpop.f32.mrf.mxu0
        %v569 = vadd.f32 0.0, %v568
        %v570 = vpop.f32.mrf.mxu0
        %v571 = vpop.f32.mrf.mxu0
        %v572 = vadd.f32 0.0, %v571
        %v573 = vpop.f32.mrf.mxu0
        %574 = vdwg.mxu0
        %v575 = vadd.f32 %v521, %v569
        %v576 = vadd.f32 %v522, %v572
        %577 = vst [vmem:[#allocation2] sm:$0xff] %v575
        %578 = vst [vmem:[#allocation2 + $0x8] sm:$0xff] %v576
        // Predicated region
        $region57: #{tpu_custom_call.1} parent=47 // pred_check
          %p579 = pneg %p455
        $region58: #{tpu_custom_call.1} parent=47 // pred_check_branch
          %581 = sbr.rel (%p579) target = $region60
        $region59: #{tpu_custom_call.1} parent=47 // pred_region
          %v582 = vld [vmem:[%s450] sm:$0xff]
          %v583 = vld [vmem:[%s450 + $0x8] sm:$0xff]
          %v584 = vrcp.pop %v582
          %v585 = vrcp.pop %v583
          %v586 = vld [vmem:[#allocation2] sm:$0xff]
          %v587 = vld [vmem:[#allocation2 + $0x8] sm:$0xff]
          %v588 = vsub.f32 %v582, 1.0
          %v589 = vsub.f32 %v583, 1.0
          %v590 = vld [vmem:[%s4] sm:$0x1]
          %592 = vset.pattern.permute.xlu0 0
          %593 = vperm.xlu0 %592, %v588
          %v594 = vpop.permute.xlu0 %593
          %597 = vset.pattern.permute.xlu0 0
          %598 = vperm.xlu0 %597, %v589
          %v599 = vpop.permute.xlu0 %598
          %v602 = vlaneseq
          %v603 = vshrl.u32 %v602, 7
          %v604 = vsub.s32 0, %v603
          %v605 = vrot.slane %v590, %v604
          %v607 = vmul.f32 %v594, %v605
          %v608 = vmul.f32 %v599, %v605
          %v609 = vadd.f32 %v586, %v607
          %v610 = vadd.f32 %v587, %v608
          %612 = vset.pattern.permute.xlu0 0
          %613 = vperm.xlu0 %612, %v584
          %v614 = vpop.permute.xlu0 %613
          %617 = vset.pattern.permute.xlu0 0
          %618 = vperm.xlu0 %617, %v585
          %v619 = vpop.permute.xlu0 %618
          %v621 = vmul.f32 %v609, %v614
          %v622 = vmul.f32 %v610, %v619
          %v623 = vld [vmem:[%s5] sm:$0x1]
          %v625 = vlaneseq
          %v626 = vshrl.u32 %v625, 7
          %v627 = vsub.s32 0, %v626
          %v628 = vrot.slane %v623, %v627
          %v630 = vadd.f32 %v621, %v628
          %v631 = vadd.f32 %v622, %v628
          %v632 = vmax.f32 %v630, 0.0
          %v633 = vmax.f32 %v631, 0.0
          %634 = vst [vmem:[%s411] sm:$0xff] %v632
          %635 = vst [vmem:[%s411 + $0x8] sm:$0xff] %v633
          %v636 = vld [vmem:[%s6] sm:$0x1]
          %v638 = vlaneseq
          %v639 = vshrl.u32 %v638, 7
          %v640 = vsub.s32 0, %v639
          %v641 = vrot.slane %v636, %v640
          %v643 = vadd.f32 %v630, %v641
          %v644 = vadd.f32 %v631, %v641
          %v645 = vmax.f32 %v643, 0.0
          %v646 = vmax.f32 %v644, 0.0
          %647 = vst [vmem:[%s418] sm:$0xff] %v645
          %648 = vst [vmem:[%s418 + $0x8] sm:$0xff] %v646
        $region60: #{tpu_custom_call.1} parent=47 // pred_fallthru
          _
        %s649 = sand.u32 %s226, 1
        %s650 = scalar_lea.sflag [#allocation5], %s649
        %s651 = sand.u32 %s226, 1
        %s652 = smul.addr %s651, 16
        %s653 = scalar_lea.vmem [#allocation6], %s652
        %s654 = sand.u32 %s254, 1
        %s655 = scalar_lea.sflag [#allocation8], %s654
        %s656 = sand.u32 %s254, 1
        %s657 = smul.addr %s656, 16
        %s658 = scalar_lea.vmem [#allocation7], %s657
        // Predicated region
        $region61: #{tpu_custom_call.1} parent=47 // pred_check
          %p659 = pneg %p236
        $region62: #{tpu_custom_call.1} parent=47 // pred_check_branch
          %661 = sbr.rel (%p659) target = $region64
        $region63: #{tpu_custom_call.1} parent=47 // pred_region
          %s662 = smul.u32 2, %s33
          %s664 = ssub.s32 256, 256
          %665 = vsyncadd %s650, %s664
          %s666 = smul.addr %s32, 2
          %s667 = sadd.s32 %s662, %s666
          %s668 = smul.addr %s667, 128
          %s669 = scalar_lea.hbm %s7, %s668
          %s670 = sshll.u32 %s653, 4
          %s671 = int_to_ptr.vmem [resolvable:$true] %s670
          %676 = dma.vmem_to_hbm [thread:$0]  %s671, 256, %s669, %s650, 128, 128, 8
        $region64: #{tpu_custom_call.1} parent=47 // pred_fallthru
          _
        // Predicated region
        $region65: #{tpu_custom_call.1} parent=47 // pred_check
          %p677 = pneg %p264
        $region66: #{tpu_custom_call.1} parent=47 // pred_check_branch
          %679 = sbr.rel (%p677) target = $region68
        $region67: #{tpu_custom_call.1} parent=47 // pred_region
          %s680 = smul.u32 2, %s33
          %s682 = ssub.s32 256, 256
          %683 = vsyncadd %s655, %s682
          %s684 = smul.addr %s32, 2
          %s685 = sadd.s32 %s680, %s684
          %s686 = smul.addr %s685, 128
          %s687 = scalar_lea.hbm %s8, %s686
          %s688 = sshll.u32 %s658, 4
          %s689 = int_to_ptr.vmem [resolvable:$true] %s688
          %694 = dma.vmem_to_hbm [thread:$0]  %s689, 256, %s687, %s655, 128, 128, 8
        $region68: #{tpu_custom_call.1} parent=47 // pred_fallthru
          _
      $region48: #{tpu_custom_call.1} parent=5 // pred_fallthru
        _
      %p695 = scmp.le.s32.totalorder 2, %s22
      // Predicated region
      $region69: #{tpu_custom_call.1} parent=5 // pred_check
        %p696 = pneg %p695
      $region70: #{tpu_custom_call.1} parent=5 // pred_check_branch
        %698 = sbr.rel (%p696) target = $region72
      $region71: #{tpu_custom_call.1} parent=5 // pred_region
        %s699 = ssub.s32 %s22, 2
        // Predicated region
        $region73: #{tpu_custom_call.1} parent=71 // pred_check
          %p700 = pneg %p242
        $region74: #{tpu_custom_call.1} parent=71 // pred_check_branch
          %702 = sbr.rel (%p700) target = $region76
        $region75: #{tpu_custom_call.1} parent=71 // pred_region
          %s703 = sand.u32 %s227, 1
          %s704 = scalar_lea.sflag [#allocation5], %s703
          %s705 = sand.u32 %s227, 1
          %s706 = smul.addr %s705, 16
          %s707 = scalar_lea.vmem [#allocation6], %s706
          %708 = dma.done %s704, 256
        $region76: #{tpu_custom_call.1} parent=71 // pred_fallthru
          _
        // Predicated region
        $region77: #{tpu_custom_call.1} parent=71 // pred_check
          %p709 = pneg %p270
        $region78: #{tpu_custom_call.1} parent=71 // pred_check_branch
          %711 = sbr.rel (%p709) target = $region80
        $region79: #{tpu_custom_call.1} parent=71 // pred_region
          %s712 = sand.u32 %s255, 1
          %s713 = scalar_lea.sflag [#allocation8], %s712
          %s714 = sand.u32 %s255, 1
          %s715 = smul.addr %s714, 16
          %s716 = scalar_lea.vmem [#allocation7], %s715
          %717 = dma.done %s713, 256
        $region80: #{tpu_custom_call.1} parent=71 // pred_fallthru
          _
      $region72: #{tpu_custom_call.1} parent=5 // pred_fallthru
        _
    $region6: #{tpu_custom_call.1} parent=1 // loop_footer
      %s26 = sadd.s32 1, %s22
    $region7: #{tpu_custom_call.1} parent=1 // loop_footer_branch
      %21 = sbr.rel target = $region3
    $region8: #{tpu_custom_call.1} parent=1 // loop_exit
      _
    %718 = vsyncpa [#allocation4], 1
    %s719 = scalar_lea.sflag [#allocation4], 1
    %720 = vsyncpa %s719, 1
    %721 = vsyncpa [#allocation5], 1
    %s722 = scalar_lea.sflag [#allocation5], 1
    %723 = vsyncpa %s722, 1
    %724 = vsyncpa [#allocation8], 1
    %s725 = scalar_lea.sflag [#allocation8], 1
    %726 = vsyncpa %s725, 1

</llo_original>
